<compile_context>
chip_gen: v6e
topology: v6e:2x2x1
jax: 0.10.0
libtpu: 0.0.40
codegen_flags: <defaults>
</compile_context>

<pallas_src>
import jax
import jax.numpy as jnp
from jax.experimental import pallas as pl
from jax.experimental.pallas import tpu as pltpu

LANE = 128
_VMEM_BUDGET = 6 * 1024 * 1024          # per-grid-step working-set budget (safe on v7x's 64 MiB VMEM)
_COMPILER_KW = dict(vmem_limit_bytes=32 * 1024 * 1024)


# ---------------------------------------------------------------------------
# small helpers
# ---------------------------------------------------------------------------
def _ceil_to(x, m):
    return ((x + m - 1) // m) * m


def _pad_last(a, target):
    pad = target - a.shape[-1]
    if pad == 0:
        return a
    return jnp.pad(a, [(0, 0)] * (a.ndim - 1) + [(0, pad)])


def _pick_row_tile(M, max_rows=512):
    """Largest divisor of M <= max_rows that is a multiple of 8 (or == M),
    preferring a >=2-step grid so both v7x TensorCores get work."""
    cands = [d for d in range(1, min(M, max_rows) + 1)
             if M % d == 0 and (d % 8 == 0 or d == M)]
    if not cands:
        return M
    multi = [d for d in cands if M // d >= 2]
    return max(multi) if multi else max(cands)


def _pick_batch_tile(B, rows_per_b, bytes_per_b, budget=_VMEM_BUDGET, max_rows=2048):
    """Largest divisor of B whose block fits the VMEM budget, preferring >=2 grid steps."""
    cands = [d for d in range(1, B + 1)
             if B % d == 0
             and d * bytes_per_b <= budget
             and d * rows_per_b <= max_rows
             and ((d * rows_per_b) % 8 == 0 or d == B)]
    if not cands:
        return 1
    multi = [d for d in cands if B // d >= 2]
    return max(multi) if multi else max(cands)


def fold_bn(gamma, beta, mean, var, eps=1e-5):
    scale = gamma / jnp.sqrt(var + eps)
    bias = beta - mean * scale
    return scale, bias


# ---------------------------------------------------------------------------
# Pallas kernels
# ---------------------------------------------------------------------------
def _mm_bias_relu_kernel(x_ref, w_ref, b_ref, o_ref):
    acc = jnp.dot(x_ref[...], w_ref[...], preferred_element_type=jnp.float32)
    o_ref[...] = jnp.maximum(acc + b_ref[...], 0.0).astype(o_ref.dtype)


def _mm_bias_res_relu_kernel(x_ref, w_ref, b_ref, r_ref, o_ref):
    acc = jnp.dot(x_ref[...], w_ref[...], preferred_element_type=jnp.float32)
    y = acc + b_ref[...] + r_ref[...].astype(jnp.float32)
    o_ref[...] = jnp.maximum(y, 0.0).astype(o_ref.dtype)


def matmul_bias_relu(x, w, bias, residual=None, out_dtype=jnp.bfloat16, max_rows=512):
    """relu((x @ w) + bias [+ residual]); bf16 operands, fp32 accumulation, row-tiled."""
    M, K = x.shape
    Kw, N = w.shape
    assert K == Kw
    tm = _pick_row_tile(M, max_rows)
    grid = (M // tm,)

    x_spec = pl.BlockSpec((tm, K), lambda i: (i, 0))
    w_spec = pl.BlockSpec((K, N), lambda i: (0, 0))
    b_spec = pl.BlockSpec((1, N), lambda i: (0, 0))
    o_spec = pl.BlockSpec((tm, N), lambda i: (i, 0))
    out_shape = jax.ShapeDtypeStruct((M, N), out_dtype)

    bytes_acc = (x.size * x.dtype.itemsize + w.size * w.dtype.itemsize
                 + bias.size * 4 + M * N * jnp.dtype(out_dtype).itemsize)
    if residual is not None:
        bytes_acc += residual.size * residual.dtype.itemsize
    cost = pl.CostEstimate(flops=2 * M * K * N, transcendentals=0,
                           bytes_accessed=int(bytes_acc))
    cparams = pltpu.CompilerParams(dimension_semantics=("parallel",), **_COMPILER_KW)

    if residual is None:
        return pl.pallas_call(
            _mm_bias_relu_kernel,
            out_shape=out_shape, grid=grid,
            in_specs=[x_spec, w_spec, b_spec],
            out_specs=o_spec,
            compiler_params=cparams, cost_estimate=cost,
        )(x, w, bias)

    r_spec = pl.BlockSpec((tm, N), lambda i: (i, 0))
    return pl.pallas_call(
        _mm_bias_res_relu_kernel,
        out_shape=out_shape, grid=grid,
        in_specs=[x_spec, w_spec, b_spec, r_spec],
        out_specs=o_spec,
        compiler_params=cparams, cost_estimate=cost,
    )(x, w, bias, residual)


def shifted_conv_bn_relu(xp, w_taps, bias, taps, out_extent, out_dtype=jnp.bfloat16):
    """Fused small-window conv + folded-BN bias + ReLU, no materialized im2col.

    xp:      (B, P1, P2, C)  zero-padded bf16 input slabs
    w_taps:  (T, C, Cout)    per-tap BN-folded bf16 weights
    bias:    (1, Cout)       f32
    taps:    list of T static (o1, o2) window offsets
    out_extent: (S1, S2)     output extent per slab
    returns  (B*S1*S2, Cout)
    """
    B, P1, P2, C = xp.shape
    T, Cw, Cout = w_taps.shape
    S1, S2 = out_extent
    assert Cw == C and T == len(taps)

    rows_per_b = S1 * S2
    bytes_per_b = (P1 * P2 * C * 2          # input slab (bf16, double-buffered below)
                   + rows_per_b * Cout * 2  # output slab
                   + rows_per_b * Cout * 4)  # fp32 accumulator
    tb = _pick_batch_tile(B, rows_per_b, 2 * bytes_per_b)
    grid = (B // tb,)
    M = B * rows_per_b
    rows = tb * rows_per_b

    def kernel(x_ref, w_ref, b_ref, o_ref):
        x = x_ref[...]                                          # (tb, P1, P2, C)
        acc = jnp.zeros((rows, Cout), jnp.float32)
        for t, (o1, o2) in enumerate(taps):                     # unrolled tap loop
            win = x[:, o1:o1 + S1, o2:o2 + S2, :]               # (tb, S1, S2, C)
            acc = acc + jnp.dot(win.reshape(rows, C), w_ref[t],
                                preferred_element_type=jnp.float32)
        y = acc + b_ref[...]
        o_ref[...] = jnp.maximum(y, 0.0).astype(o_ref.dtype)

    x_spec = pl.BlockSpec((tb, P1, P2, C), lambda i: (i, 0, 0, 0))
    w_spec = pl.BlockSpec((T, C, Cout), lambda i: (0, 0, 0))
    b_spec = pl.BlockSpec((1, Cout), lambda i: (0, 0))
    o_spec = pl.BlockSpec((rows, Cout), lambda i: (i, 0))

    cost = pl.CostEstimate(
        flops=2 * M * C * Cout * T, transcendentals=0,
        bytes_accessed=int(xp.size * 2 + w_taps.size * 2 + bias.size * 4 + M * Cout * 2))

    return pl.pallas_call(
        kernel,
        out_shape=jax.ShapeDtypeStruct((M, Cout), out_dtype),
        grid=grid,
        in_specs=[x_spec, w_spec, b_spec],
        out_specs=o_spec,
        compiler_params=pltpu.CompilerParams(dimension_semantics=("parallel",),
                                             **_COMPILER_KW),
        cost_estimate=cost,
    )(xp, w_taps, bias)


# ---------------------------------------------------------------------------
# Parameter init (PyTorch weight layouts: O, I, kD, kH, kW)
# ---------------------------------------------------------------------------
def init_params(key, in_planes, out_planes):
    ks = jax.random.split(key, 8)
    o4 = out_planes * 4

    def bn_params(k, c):
        k1, k2, k3, k4 = jax.random.split(k, 4)
        gamma = jax.random.uniform(k1, (c,), jnp.float32, 0.5, 1.5)
        beta = jax.random.normal(k2, (c,), jnp.float32) * 0.1
        mean = jax.random.normal(k3, (c,), jnp.float32) * 0.1
        var = jax.random.uniform(k4, (c,), jnp.float32, 0.5, 1.5)
        return gamma, beta, mean, var

    return {
        "w1": jax.random.normal(ks[0], (out_planes, in_planes, 1, 1, 1), jnp.float32) * 0.1,
        "w2": jax.random.normal(ks[1], (out_planes, out_planes, 1, 3, 3), jnp.float32) * 0.1,
        "w3": jax.random.normal(ks[2], (out_planes, out_planes, 3, 1, 1), jnp.float32) * 0.1,
        "w4": jax.random.normal(ks[3], (o4, out_planes, 1, 1, 1), jnp.float32) * 0.1,
        "bn1": bn_params(ks[4], out_planes),
        "bn2": bn_params(ks[5], out_planes),
        "bn3": bn_params(ks[6], out_planes),
        "bn4": bn_params(ks[7], o4),
    }


# ---------------------------------------------------------------------------
# Forward pass (Pallas) — P3D-A block
# ---------------------------------------------------------------------------
def p3d_forward_pallas(x_ncdhw, params, eps=1e-5):
    N, Cin, D, H, W = x_ncdhw.shape
    out_planes = params["w1"].shape[0]
    o4 = out_planes * 4
    Cp = _ceil_to(out_planes, LANE)          # lane-dense intermediate channels
    O4p = _ceil_to(o4, LANE)
    M = N * D * H * W
    ND = N * D
    S = H * W

    # ---- host-side prep: layout, BN fold into weights, lane padding, bf16 cast
    x_ndhwc = jnp.transpose(x_ncdhw, (0, 2, 3, 4, 1))                   # NDHWC
    x_rows = x_ndhwc.reshape(M, Cin).astype(jnp.bfloat16)

    s1, b1 = fold_bn(*params["bn1"], eps)
    s2, b2 = fold_bn(*params["bn2"], eps)
    s3, b3 = fold_bn(*params["bn3"], eps)
    s4, b4 = fold_bn(*params["bn4"], eps)

    w1 = params["w1"][:, :, 0, 0, 0].T * s1[None, :]                    # (Cin, out)
    w1 = _pad_last(w1, Cp).astype(jnp.bfloat16)
    b1p = _pad_last(b1.reshape(1, -1), Cp).astype(jnp.float32)

    w2 = jnp.transpose(params["w2"][:, :, 0, :, :], (2, 3, 1, 0))       # (kh, kw, I, O)
    w2 = (w2.reshape(9, out_planes, out_planes) * s2[None, None, :])
    w2 = jnp.pad(w2, ((0, 0), (0, Cp - out_planes), (0, Cp - out_planes))).astype(jnp.bfloat16)
    b2p = _pad_last(b2.reshape(1, -1), Cp).astype(jnp.float32)

    w3 = jnp.transpose(params["w3"][:, :, :, 0, 0], (2, 1, 0))          # (kd, I, O)
    w3 = w3 * s3[None, None, :]
    w3 = jnp.pad(w3, ((0, 0), (0, Cp - out_planes), (0, Cp - out_planes))).astype(jnp.bfloat16)
    b3p = _pad_last(b3.reshape(1, -1), Cp).astype(jnp.float32)

    w4 = params["w4"][:, :, 0, 0, 0].T * s4[None, :]                    # (out, o4)
    w4 = jnp.pad(w4, ((0, Cp - out_planes), (0, O4p - o4))).astype(jnp.bfloat16)
    b4p = _pad_last(b4.reshape(1, -1), O4p).astype(jnp.float32)

    # identity residual (in_planes == 4*out_planes, downsample=None), lane-padded
    residual = _pad_last(x_ndhwc.reshape(M, Cin), O4p).astype(jnp.bfloat16)

    # ---- stage 1: 1x1x1 conv + bn1 + relu
    # TODO(synk): could be fused into the stage-2 tap kernel (needs border re-zeroing).
    h = matmul_bias_relu(x_rows, w1, b1p)                               # (M, Cp) bf16

    # ---- stage 2: 1x3x3 spatial conv + bn2 + relu (fused 9-tap kernel, no im2col)
    hp = jnp.pad(h.reshape(ND, H, W, Cp), ((0, 0), (1, 1), (1, 1), (0, 0)))
    taps9 = [(kh, kw) for kh in range(3) for kw in range(3)]
    h = shifted_conv_bn_relu(hp, w2, b2p, taps9, (H, W))                # (M, Cp) bf16

    # ---- stage 3: 3x1x1 temporal conv + bn3 + relu (fused 3-tap kernel)
    hp = jnp.pad(h.reshape(N, D, S, Cp), ((0, 0), (1, 1), (0, 0), (0, 0)))
    taps3 = [(kd, 0) for kd in range(3)]
    h = shifted_conv_bn_relu(hp, w3, b3p, taps3, (D, S))                # (M, Cp) bf16

    # ---- stage 4: 1x1x1 conv + bn4 + residual add + relu (fused, f32 output)
    out = matmul_bias_relu(h, w4, b4p, residual=residual, out_dtype=jnp.float32)

    out = out[:, :o4].reshape(N, D, H, W, o4)
    return jnp.transpose(out, (0, 4, 1, 2, 3))                          # back to NCDHW


# ---------------------------------------------------------------------------
# Pure-JAX reference (NCDHW, lax conv, fp32) for verification
# ---------------------------------------------------------------------------
def p3d_forward_ref(x, params, eps=1e-5):
    def conv3d(t, w, pad):
        return jax.lax.conv_general_dilated(
            t, w, (1, 1, 1), [(p, p) for p in pad],
            dimension_numbers=("NCDHW", "OIDHW", "NCDHW"))

    def bn(t, bnp):
        gamma, beta, mean, var = bnp
        s = gamma / jnp.sqrt(var + eps)
        b = beta - mean * s
        return t * s[None, :, None, None, None] + b[None, :, None, None, None]

    relu = lambda t: jnp.maximum(t, 0.0)
    residual = x
    out = relu(bn(conv3d(x, params["w1"], (0, 0, 0)), params["bn1"]))
    out = relu(bn(conv3d(out, params["w2"], (0, 1, 1)), params["bn2"]))
    out = relu(bn(conv3d(out, params["w3"], (1, 0, 0)), params["bn3"]))
    out = bn(conv3d(out, params["w4"], (0, 0, 0)), params["bn4"])
    return relu(out + residual)


if __name__ == "__main__":
    key = jax.random.PRNGKey(0)
    kx, kp = jax.random.split(key)

    # in_planes == out_planes*4 so the identity residual (downsample=None) is valid.
    N, D, H, W = 2, 4, 8, 8
    in_planes, out_planes = 16, 4

    x = jax.random.normal(kx, (N, in_planes, D, H, W), jnp.float32)
    params = init_params(kp, in_planes, out_planes)

    out = jax.block_until_ready(p3d_forward_pallas(x, params))
    ref = p3d_forward_ref(x, params)

    assert out.shape == ref.shape == (N, out_planes * 4, D, H, W)
    # bf16 operands (fp32 accumulation) -> compare with a normalized tolerance.
    denom = float(jnp.max(jnp.abs(ref))) + 1e-6
    err = float(jnp.max(jnp.abs(out - ref))) / denom
    assert err < 3e-2, f"Pallas output mismatch vs reference (normalized max err {err:.4f})"
    print("KERNEL_OK")
</pallas_src>

<mosaic_0001>
module attributes {stable_mosaic.version = 11 : i64} {
  func.func @_mm_bias_relu_kernel(%arg0: i32, %arg1: memref<256x16xbf16, #tpu.memory_space<vmem>>, %arg2: memref<16x128xbf16, #tpu.memory_space<vmem>>, %arg3: memref<1x128xf32, #tpu.memory_space<vmem>>, %arg4: memref<256x128xbf16, #tpu.memory_space<vmem>>) attributes {dimension_semantics = [#tpu.dimension_semantics<parallel>], iteration_bounds = array<i64: 2>, scalar_prefetch = 0 : i64, scratch_operands = 0 : i64, tpu.core_type = #tpu.core_type<tc>, window_params = [{transform_indices = @transform_0, window_bounds = array<i64: 256, 16>}, {pipeline_mode = #tpu.pipeline_mode<synchronous>, transform_indices = @transform_1, window_bounds = array<i64: 16, 128>}, {pipeline_mode = #tpu.pipeline_mode<synchronous>, transform_indices = @transform_2, window_bounds = array<i64: 1, 128>}, {transform_indices = @transform_3, window_bounds = array<i64: 256, 128>}]} {
    %c0 = arith.constant 0 : index
    %c0_0 = arith.constant 0 : index
    %0 = vector.load %arg1[%c0, %c0_0] : memref<256x16xbf16, #tpu.memory_space<vmem>>, vector<256x16xbf16>
    %c0_1 = arith.constant 0 : index
    %c0_2 = arith.constant 0 : index
    %1 = vector.load %arg2[%c0_1, %c0_2] : memref<16x128xbf16, #tpu.memory_space<vmem>>, vector<16x128xbf16>
    %cst = arith.constant dense<0.000000e+00> : vector<256x128xf32>
    %2 = tpu.matmul %0, %1, %cst {dimension_numbers = #tpu.dot_dimension_numbers<[1], [0], [0], [1], [0, 0, 1, 1], [], []>} : vector<256x16xbf16>, vector<16x128xbf16>, vector<256x128xf32> -> vector<256x128xf32>
    %c0_3 = arith.constant 0 : index
    %c0_4 = arith.constant 0 : index
    %3 = vector.load %arg3[%c0_3, %c0_4] : memref<1x128xf32, #tpu.memory_space<vmem>>, vector<1x128xf32>
    %4 = vector.broadcast %3 : vector<1x128xf32> to vector<256x128xf32>
    %5 = arith.addf %2, %4 : vector<256x128xf32>
    %cst_5 = arith.constant 0.000000e+00 : f32
    %6 = vector.broadcast %cst_5 : f32 to vector<256x128xf32>
    %7 = arith.maximumf %5, %6 : vector<256x128xf32>
    %8 = arith.truncf %7 : vector<256x128xf32> to vector<256x128xbf16>
    %c0_6 = arith.constant 0 : index
    %c0_7 = arith.constant 0 : index
    %9 = vector.load %arg4[%c0_6, %c0_7] : memref<256x128xbf16, #tpu.memory_space<vmem>>, vector<256x128xbf16>
    tpu.vector_store %arg4[%c0_6, %c0_7], %8 {strides = array<i32>} : memref<256x128xbf16, #tpu.memory_space<vmem>>, vector<256x128xbf16>,
    return
  }
  func.func @transform_0(%arg0: i32) -> (i32, i32) {
    %c0_i32 = arith.constant 0 : i32
    %c0_i32_0 = arith.constant 0 : i32
    return %arg0, %c0_i32 : i32, i32
  }
  func.func @transform_1(%arg0: i32) -> (i32, i32) {
    %c0_i32 = arith.constant 0 : i32
    %c0_i32_0 = arith.constant 0 : i32
    %c0_i32_1 = arith.constant 0 : i32
    return %c0_i32, %c0_i32_0 : i32, i32
  }
  func.func @transform_2(%arg0: i32) -> (i32, i32) {
    %c0_i32 = arith.constant 0 : i32
    %c0_i32_0 = arith.constant 0 : i32
    %c0_i32_1 = arith.constant 0 : i32
    return %c0_i32, %c0_i32_0 : i32, i32
  }
  func.func @transform_3(%arg0: i32) -> (i32, i32) {
    %c0_i32 = arith.constant 0 : i32
    %c0_i32_0 = arith.constant 0 : i32
    return %arg0, %c0_i32 : i32, i32
  }
}

</mosaic_0001>

<llo_original>
// kernel: tpu_custom_call.1
$region0: #{tpu_custom_call.1}
  #allocation0 [shape = 'u32[]', space=smem, size = 0x4, offset = 0x4, fixed_abs, tag = 'smem constant byte address 0x4 - core index']
  #allocation1 [shape = 'u32[144,128]{1,0:T(1,128)}', space=vmem, size = 0x12000, scoped, tag = 'internal scratch']
  %s0 = inlined_call_operand.vmem [shape: bf16[512,16], index: 0, kind: input, shape index: {}]
  %s1 = inlined_call_operand.vmem [shape: bf16[16,128], index: 1, kind: input, shape index: {}]
  %s2 = inlined_call_operand.vmem [shape: f32[1,128], index: 2, kind: input, shape index: {}]
  %s3 = inlined_call_operand.hbm [shape: bf16[512,128], index: 3, kind: output, shape index: {}]
  %s4 = sld [smem:[#allocation0]]
  $region45: #{tpu_custom_call.1} parent=0
    _
  %s6 = ssub.s32 1, %s4
  %s7 = scalar_select 0, %s6, %s4
  $region1: #{tpu_custom_call.1} parent=0
    #allocation2 [shape = 'u8[131072]{0}', space=vmem, size = 0x20000, scoped, tag = 'output window, operand 0']
    #allocation3 [shape = 's32[2]{0}', space=sflag, size = 0x8, scoped, tag = 'scoped memory for tpu_custom_call.1']
    %8 = vsyncpa [#allocation3], 0
    %s9 = scalar_lea.sflag [#allocation3], 1
    %10 = vsyncpa %s9, 0
    loop: start=0, step=1, limit=4
    $region2: #{tpu_custom_call.1} parent=1 // loop_pre_header
      _
    $region3: #{tpu_custom_call.1} parent=1 // loop_header
      %s12 = sphi 0, %s16
      %p13 = scmp.ge.s32.totalorder %s12, 4
      %s22 = sphi 0, %s24
      %s25 = sphi 0, %s22
      %s26 = sphi 0, %s25
      %s42 = sphi 0, %s26
      %s46 = sphi 0, %s46
      %s48 = sphi 0, %s46
      %s49 = sphi 0, %s48
      %s63 = sphi 0, %s49
      %s67 = sphi 0, %s67
      %s69 = sphi 0, %s67
      %s70 = sphi 0, %s69
      %s84 = sphi 0, %s70
      %s90 = sphi 0, %s92
      %s93 = sphi 0, %s90
      %s94 = sphi 0, %s93
      %s110 = sphi 0, %s94
    $region4: #{tpu_custom_call.1} parent=1 // loop_header_branch
      %15 = sbr.rel (%p13) target = $region8
    $region5: #{tpu_custom_call.1} parent=1 // loop_body
      %s17 = ssub.s32 %s12, 1
      %s18 = ssub.s32 %s12, 2
      %s19 = sadd.s32 %s12, 1
      %s20 = ssub.s32 %s12, %s19
      %p21 = scmp.eq.s32.totalorder %s20, 0
      %s23 = sadd.s32 %s22, 1
      %s24 = scalar_select %p21, %s22, %s23
      %p27 = pneg %p21
      %p28 = scmp.eq.s32.totalorder %s12, 1
      %p29 = por %p27, %p28
      %p30 = scmp.ne.s32.totalorder %s22, %s25
      %p31 = scmp.eq.s32.totalorder %s12, 0
      %p32 = por %p30, %p31
      %p33 = scmp.ne.s32.totalorder %s22, %s25
      %p34 = scmp.eq.s32.totalorder %s17, 1
      %p35 = por %p33, %p34
      %p36 = scmp.ne.s32.totalorder %s25, %s26
      %p37 = scmp.eq.s32.totalorder %s17, 0
      %p38 = por %p36, %p37
      %p39 = scmp.ne.s32.totalorder %s25, %s26
      %p40 = scmp.eq.s32.totalorder %s18, 1
      %p41 = por %p39, %p40
      %p43 = scmp.ne.s32.totalorder %s26, %s42
      %p44 = scmp.eq.s32.totalorder %s18, 0
      %p45 = por %p43, %p44
      %s47 = sadd.s32 %s46, 1
      %p50 = scmp.eq.s32.totalorder %s12, 1
      %p51 = scmp.ne.s32.totalorder %s46, %s48
      %p52 = scmp.eq.s32.totalorder %s12, 0
      %p53 = por %p51, %p52
      %p54 = scmp.ne.s32.totalorder %s46, %s48
      %p55 = scmp.eq.s32.totalorder %s17, 1
      %p56 = por %p54, %p55
      %p57 = scmp.ne.s32.totalorder %s48, %s49
      %p58 = scmp.eq.s32.totalorder %s17, 0
      %p59 = por %p57, %p58
      %p60 = scmp.ne.s32.totalorder %s48, %s49
      %p61 = scmp.eq.s32.totalorder %s18, 1
      %p62 = por %p60, %p61
      %p64 = scmp.ne.s32.totalorder %s49, %s63
      %p65 = scmp.eq.s32.totalorder %s18, 0
      %p66 = por %p64, %p65
      %s68 = sadd.s32 %s67, 1
      %p71 = scmp.eq.s32.totalorder %s12, 1
      %p72 = scmp.ne.s32.totalorder %s67, %s69
      %p73 = scmp.eq.s32.totalorder %s12, 0
      %p74 = por %p72, %p73
      %p75 = scmp.ne.s32.totalorder %s67, %s69
      %p76 = scmp.eq.s32.totalorder %s17, 1
      %p77 = por %p75, %p76
      %p78 = scmp.ne.s32.totalorder %s69, %s70
      %p79 = scmp.eq.s32.totalorder %s17, 0
      %p80 = por %p78, %p79
      %p81 = scmp.ne.s32.totalorder %s69, %s70
      %p82 = scmp.eq.s32.totalorder %s18, 1
      %p83 = por %p81, %p82
      %p85 = scmp.ne.s32.totalorder %s70, %s84
      %p86 = scmp.eq.s32.totalorder %s18, 0
      %p87 = por %p85, %p86
      %s88 = ssub.s32 %s12, %s19
      %p89 = scmp.eq.s32.totalorder %s88, 0
      %s91 = sadd.s32 %s90, 1
      %s92 = scalar_select %p89, %s90, %s91
      %p95 = pneg %p89
      %p96 = scmp.eq.s32.totalorder %s12, 1
      %p97 = por %p95, %p96
      %p98 = scmp.ne.s32.totalorder %s90, %s93
      %p99 = scmp.eq.s32.totalorder %s12, 0
      %p100 = por %p98, %p99
      %p101 = scmp.ne.s32.totalorder %s90, %s93
      %p102 = scmp.eq.s32.totalorder %s17, 1
      %p103 = por %p101, %p102
      %p104 = scmp.ne.s32.totalorder %s93, %s94
      %p105 = scmp.eq.s32.totalorder %s17, 0
      %p106 = por %p104, %p105
      %p107 = scmp.ne.s32.totalorder %s93, %s94
      %p108 = scmp.eq.s32.totalorder %s18, 1
      %p109 = por %p107, %p108
      %p111 = scmp.ne.s32.totalorder %s94, %s110
      %p112 = scmp.eq.s32.totalorder %s18, 0
      %p113 = por %p111, %p112
      %p114 = scmp.le.s32.totalorder 1, %s12
      %p115 = scmp.lt.s32.totalorder %s12, 3
      %p116 = pnand %p114, %p115
      %p117 = pneg %p116
      // Predicated region
      $region9: #{tpu_custom_call.1} parent=5 // pred_check
        _
      $region10: #{tpu_custom_call.1} parent=5 // pred_check_branch
        %119 = sbr.rel (%p116) target = $region12
      $region11: #{tpu_custom_call.1} parent=5 // pred_region
        %s120 = ssub.s32 %s12, 1
        // Predicated region
        $region13: #{tpu_custom_call.1} parent=11 // pred_check
          %p121 = pneg %p59
        $region14: #{tpu_custom_call.1} parent=11 // pred_check_branch
          %123 = sbr.rel (%p121) target = $region16
        $region15: #{tpu_custom_call.1} parent=11 // pred_region
          _
        $region16: #{tpu_custom_call.1} parent=11 // pred_fallthru
          _
        // Predicated region
        $region17: #{tpu_custom_call.1} parent=11 // pred_check
          %p124 = pneg %p80
        $region18: #{tpu_custom_call.1} parent=11 // pred_check_branch
          %126 = sbr.rel (%p124) target = $region20
        $region19: #{tpu_custom_call.1} parent=11 // pred_region
          _
        $region20: #{tpu_custom_call.1} parent=11 // pred_fallthru
          _
      $region12: #{tpu_custom_call.1} parent=5 // pred_fallthru
        _
      %p127 = scmp.lt.s32.totalorder %s12, 2
      // Predicated region
      $region21: #{tpu_custom_call.1} parent=5 // pred_check
        %p128 = pneg %p127
      $region22: #{tpu_custom_call.1} parent=5 // pred_check_branch
        %130 = sbr.rel (%p128) target = $region24
      $region23: #{tpu_custom_call.1} parent=5 // pred_region
        // Predicated region
        $region25: #{tpu_custom_call.1} parent=23 // pred_check
          %p131 = pneg %p32
        $region26: #{tpu_custom_call.1} parent=23 // pred_check_branch
          %133 = sbr.rel (%p131) target = $region28
        $region27: #{tpu_custom_call.1} parent=23 // pred_region
          %s134 = smul.u32 32, %s12
          %p135 = scmp.lt.s32.totalorder %s134, 63
          %s136 = scalar_select %p135, %s134, 63
          %s137 = smul.addr %s136, 4
          %s138 = scalar_lea.vmem %s0, %s137
          %s139 = smul.u32 32, %s12
        $region28: #{tpu_custom_call.1} parent=23 // pred_fallthru
          _
      $region24: #{tpu_custom_call.1} parent=5 // pred_fallthru
        _
      %p140 = scmp.le.s32.totalorder 1, %s12
      %p141 = scmp.lt.s32.totalorder %s12, 3
      %p142 = pnand %p140, %p141
      %p143 = pneg %p142
      // Predicated region
      $region29: #{tpu_custom_call.1} parent=5 // pred_check
        _
      $region30: #{tpu_custom_call.1} parent=5 // pred_check_branch
        %145 = sbr.rel (%p142) target = $region32
      $region31: #{tpu_custom_call.1} parent=5 // pred_region
        %s146 = ssub.s32 %s12, 1
        %s147 = smul.u32 32, %s17
        %p148 = scmp.lt.s32.totalorder %s147, 63
        %s149 = scalar_select %p148, %s147, 63
        %s150 = smul.addr %s149, 4
        %s151 = scalar_lea.vmem %s0, %s150
        %p152 = pneg %p38
        %p153 = pneg %p35
        %p154 = pneg %p59
        %p155 = pneg %p56
        %p156 = pneg %p80
        %p157 = pneg %p77
        %p158 = pneg %p106
        %p159 = pneg %p103
        %s160 = sand.u32 %s93, 1
        %s161 = scalar_lea.sflag [#allocation3], %s160
        %s162 = sand.u32 %s93, 1
        %s163 = smul.addr %s162, 128
        %s164 = scalar_lea.vmem [#allocation2], %s163
        %s165 = smul.u32 32, %s17
        %p166 = scmp.lt.s32.totalorder %s165, 63
        %s167 = scalar_select %p166, %s165, 63
        %s168 = smul.addr %s167, 4
        %s169 = scalar_lea.vmem %s0, %s168
        %s170 = smul.u32 32, %s17
        %s171 = smul.u32 32, %s17
        %v173 = vld [vmem:[%s169] sm:$0xf]
        %v174 = vld [vmem:[%s169 + $0x4] sm:$0xf]
        %v175 = vld [vmem:[%s169 + $0x8] sm:$0xf]
        %v176 = vld [vmem:[%s169 + $0xc] sm:$0xf]
        %v177 = vld [vmem:[%s169 + $0x10] sm:$0xf]
        %v178 = vld [vmem:[%s169 + $0x14] sm:$0xf]
        %v179 = vld [vmem:[%s169 + $0x18] sm:$0xf]
        %v180 = vld [vmem:[%s169 + $0x1c] sm:$0xf]
        %v181 = vld [vmem:[%s169 + $0x20] sm:$0xf]
        %v182 = vld [vmem:[%s169 + $0x24] sm:$0xf]
        %v183 = vld [vmem:[%s169 + $0x28] sm:$0xf]
        %v184 = vld [vmem:[%s169 + $0x2c] sm:$0xf]
        %v185 = vld [vmem:[%s169 + $0x30] sm:$0xf]
        %v186 = vld [vmem:[%s169 + $0x34] sm:$0xf]
        %v187 = vld [vmem:[%s169 + $0x38] sm:$0xf]
        %v188 = vld [vmem:[%s169 + $0x3c] sm:$0xf]
        %v189 = vld [vmem:[%s169 + $0x40] sm:$0xf]
        %v190 = vld [vmem:[%s169 + $0x44] sm:$0xf]
        %v191 = vld [vmem:[%s169 + $0x48] sm:$0xf]
        %v192 = vld [vmem:[%s169 + $0x4c] sm:$0xf]
        %v193 = vld [vmem:[%s169 + $0x50] sm:$0xf]
        %v194 = vld [vmem:[%s169 + $0x54] sm:$0xf]
        %v195 = vld [vmem:[%s169 + $0x58] sm:$0xf]
        %v196 = vld [vmem:[%s169 + $0x5c] sm:$0xf]
        %v197 = vld [vmem:[%s169 + $0x60] sm:$0xf]
        %v198 = vld [vmem:[%s169 + $0x64] sm:$0xf]
        %v199 = vld [vmem:[%s169 + $0x68] sm:$0xf]
        %v200 = vld [vmem:[%s169 + $0x6c] sm:$0xf]
        %v201 = vld [vmem:[%s169 + $0x70] sm:$0xf]
        %v202 = vld [vmem:[%s169 + $0x74] sm:$0xf]
        %v203 = vld [vmem:[%s169 + $0x78] sm:$0xf]
        %v204 = vld [vmem:[%s169 + $0x7c] sm:$0xf]
        %v205 = vld [vmem:[%s1] sm:$0xf]
        %v206 = vld [vmem:[%s1 + $0x4] sm:$0xf]
        %v207 = vld [vmem:[%s2] sm:$0x1]
        %v209 = vlaneseq
        %v210 = vshrl.u32 %v209, 7
        %v211 = vsub.s32 0, %v210
        %v212 = vrot.slane %v207, %v211
        %v246 = vunpack.c.l.b16 %v173
        %v247 = vunpack.c.l.b16 %v174
        %v248 = vunpack.c.l.b16 %v175
        %v249 = vunpack.c.l.b16 %v176
        %v250 = vunpack.c.l.b16 %v177
        %v251 = vunpack.c.l.b16 %v178
        %v252 = vunpack.c.l.b16 %v179
        %v253 = vunpack.c.l.b16 %v180
        %v254 = vunpack.c.l.b16 %v181
        %v255 = vunpack.c.l.b16 %v182
        %v256 = vunpack.c.l.b16 %v183
        %v257 = vunpack.c.l.b16 %v184
        %v258 = vunpack.c.l.b16 %v185
        %v259 = vunpack.c.l.b16 %v186
        %v260 = vunpack.c.l.b16 %v187
        %v261 = vunpack.c.l.b16 %v188
        %v262 = vunpack.c.l.b16 %v189
        %v263 = vunpack.c.l.b16 %v190
        %v264 = vunpack.c.l.b16 %v191
        %v265 = vunpack.c.l.b16 %v192
        %v266 = vunpack.c.l.b16 %v193
        %v267 = vunpack.c.l.b16 %v194
        %v268 = vunpack.c.l.b16 %v195
        %v269 = vunpack.c.l.b16 %v196
        %v270 = vunpack.c.l.b16 %v197
        %v271 = vunpack.c.l.b16 %v198
        %v272 = vunpack.c.l.b16 %v199
        %v273 = vunpack.c.l.b16 %v200
        %v274 = vunpack.c.l.b16 %v201
        %v275 = vunpack.c.l.b16 %v202
        %v276 = vunpack.c.l.b16 %v203
        %v277 = vunpack.c.l.b16 %v204
        %v278 = vpack.c.b16 %v247, %v246
        %v279 = vpack.c.b16 %v249, %v248
        %v280 = vpack.c.b16 %v251, %v250
        %v281 = vpack.c.b16 %v253, %v252
        %v282 = vpack.c.b16 %v255, %v254
        %v283 = vpack.c.b16 %v257, %v256
        %v284 = vpack.c.b16 %v259, %v258
        %v285 = vpack.c.b16 %v261, %v260
        %v286 = vpack.c.b16 %v263, %v262
        %v287 = vpack.c.b16 %v265, %v264
        %v288 = vpack.c.b16 %v267, %v266
        %v289 = vpack.c.b16 %v269, %v268
        %v290 = vpack.c.b16 %v271, %v270
        %v291 = vpack.c.b16 %v273, %v272
        %v292 = vpack.c.b16 %v275, %v274
        %v293 = vpack.c.b16 %v277, %v276
        %v296 = vunpack.c.l.b16 %v205
        %v297 = vunpack.c.l.b16 %v206
        %v298 = vpack.c.b16 %v297, %v296
        %vm300 = vcmask 130048
        %v302 = vsel %vm300, %v278, 0
        %v305 = vsel %vm300, %v279, 0
        %v308 = vsel %vm300, %v280, 0
        %v311 = vsel %vm300, %v281, 0
        %v314 = vsel %vm300, %v282, 0
        %v317 = vsel %vm300, %v283, 0
        %v320 = vsel %vm300, %v284, 0
        %v323 = vsel %vm300, %v285, 0
        %v326 = vsel %vm300, %v286, 0
        %v329 = vsel %vm300, %v287, 0
        %v332 = vsel %vm300, %v288, 0
        %v335 = vsel %vm300, %v289, 0
        %v338 = vsel %vm300, %v290, 0
        %v341 = vsel %vm300, %v291, 0
        %v344 = vsel %vm300, %v292, 0
        %v347 = vsel %vm300, %v293, 0
        %349 = vmatprep.subr.bf16.mxu0 0
        %350 = vmatpush1.bf16.msra.mxu0 0
        %351 = vmatprep.subr.bf16.mxu0 0
        %352 = vmatpush1.bf16.msra.mxu0 0
        %353 = vmatprep.subr.bf16.mxu0 0
        %354 = vmatpush1.bf16.msra.mxu0 0
        %355 = vmatprep.subr.bf16.mxu0 0
        %356 = vmatpush1.bf16.msra.mxu0 0
        %357 = vmatprep.subr.bf16.mxu0 0
        %358 = vmatpush1.bf16.msra.mxu0 0
        %359 = vmatprep.subr.bf16.mxu0 0
        %360 = vmatpush1.bf16.msra.mxu0 0
        %361 = vmatprep.subr.bf16.mxu0 0
        %362 = vmatpush1.bf16.msra.mxu0 0
        %363 = vmatprep.subr.bf16.mxu0 0
        %364 = vmatpush1.bf16.msra.mxu0 %v298
        %365 = vmatprep.subr.bf16.mxu0 0
        %366 = vmatpush2.bf16.msra.mxu0 0
        %367 = vmatprep.subr.bf16.mxu0 0
        %368 = vmatpush2.bf16.msra.mxu0 0
        %369 = vmatprep.subr.bf16.mxu0 0
        %370 = vmatpush2.bf16.msra.mxu0 0
        %371 = vmatprep.subr.bf16.mxu0 0
        %372 = vmatpush2.bf16.msra.mxu0 0
        %373 = vmatprep.subr.bf16.mxu0 0
        %374 = vmatpush2.bf16.msra.mxu0 0
        %375 = vmatprep.subr.bf16.mxu0 0
        %376 = vmatpush2.bf16.msra.mxu0 0
        %377 = vmatprep.subr.bf16.mxu0 0
        %378 = vmatpush2.bf16.msra.mxu0 0
        %379 = vmatprep.subr.bf16.mxu0 0
        %380 = vmatpush2.bf16.msra.mxu0 0
        %381 = vmatprep.mubr.bf16.mxu0 0
        %382 = vmatmul.mubr.bf16.gmra.mxu0 %v302
        %v383 = vpop.f32.mrf.mxu0
        %v384 = vadd.f32 %v212, %v383
        %v385 = vpop.f32.mrf.mxu0
        %v386 = vpop.f32.mrf.mxu0
        %v387 = vadd.f32 %v212, %v386
        %v388 = vpop.f32.mrf.mxu0
        %389 = vmatprep.mubr.bf16.mxu0 0
        %390 = vmatmul.mubr.bf16.gmra.mxu0 %v305
        %v391 = vpop.f32.mrf.mxu0
        %v392 = vadd.f32 %v212, %v391
        %v393 = vpop.f32.mrf.mxu0
        %v394 = vpop.f32.mrf.mxu0
        %v395 = vadd.f32 %v212, %v394
        %v396 = vpop.f32.mrf.mxu0
        %397 = vmatprep.mubr.bf16.mxu0 0
        %398 = vmatmul.mubr.bf16.gmra.mxu0 %v308
        %v399 = vpop.f32.mrf.mxu0
        %v400 = vadd.f32 %v212, %v399
        %v401 = vpop.f32.mrf.mxu0
        %v402 = vpop.f32.mrf.mxu0
        %v403 = vadd.f32 %v212, %v402
        %v404 = vpop.f32.mrf.mxu0
        %405 = vmatprep.mubr.bf16.mxu0 0
        %406 = vmatmul.mubr.bf16.gmra.mxu0 %v311
        %v407 = vpop.f32.mrf.mxu0
        %v408 = vadd.f32 %v212, %v407
        %v409 = vpop.f32.mrf.mxu0
        %v410 = vpop.f32.mrf.mxu0
        %v411 = vadd.f32 %v212, %v410
        %v412 = vpop.f32.mrf.mxu0
        %413 = vmatprep.mubr.bf16.mxu0 0
        %414 = vmatmul.mubr.bf16.gmra.mxu0 %v314
        %v415 = vpop.f32.mrf.mxu0
        %v416 = vadd.f32 %v212, %v415
        %v417 = vpop.f32.mrf.mxu0
        %v418 = vpop.f32.mrf.mxu0
        %v419 = vadd.f32 %v212, %v418
        %v420 = vpop.f32.mrf.mxu0
        %421 = vmatprep.mubr.bf16.mxu0 0
        %422 = vmatmul.mubr.bf16.gmra.mxu0 %v317
        %v423 = vpop.f32.mrf.mxu0
        %v424 = vadd.f32 %v212, %v423
        %v425 = vpop.f32.mrf.mxu0
        %v426 = vpop.f32.mrf.mxu0
        %v427 = vadd.f32 %v212, %v426
        %v428 = vpop.f32.mrf.mxu0
        %429 = vmatprep.mubr.bf16.mxu0 0
        %430 = vmatmul.mubr.bf16.gmra.mxu0 %v320
        %v431 = vpop.f32.mrf.mxu0
        %v432 = vadd.f32 %v212, %v431
        %v433 = vpop.f32.mrf.mxu0
        %v434 = vpop.f32.mrf.mxu0
        %v435 = vadd.f32 %v212, %v434
        %v436 = vpop.f32.mrf.mxu0
        %437 = vmatprep.mubr.bf16.mxu0 0
        %438 = vmatmul.mubr.bf16.gmra.mxu0 %v323
        %v439 = vpop.f32.mrf.mxu0
        %v440 = vadd.f32 %v212, %v439
        %v441 = vpop.f32.mrf.mxu0
        %v442 = vpop.f32.mrf.mxu0
        %v443 = vadd.f32 %v212, %v442
        %v444 = vpop.f32.mrf.mxu0
        %445 = vmatprep.mubr.bf16.mxu0 0
        %446 = vmatmul.mubr.bf16.gmra.mxu0 %v326
        %v447 = vpop.f32.mrf.mxu0
        %v448 = vadd.f32 %v212, %v447
        %v449 = vpop.f32.mrf.mxu0
        %v450 = vpop.f32.mrf.mxu0
        %v451 = vadd.f32 %v212, %v450
        %v452 = vpop.f32.mrf.mxu0
        %453 = vmatprep.mubr.bf16.mxu0 0
        %454 = vmatmul.mubr.bf16.gmra.mxu0 %v329
        %v455 = vpop.f32.mrf.mxu0
        %v456 = vadd.f32 %v212, %v455
        %v457 = vpop.f32.mrf.mxu0
        %v458 = vpop.f32.mrf.mxu0
        %v459 = vadd.f32 %v212, %v458
        %v460 = vpop.f32.mrf.mxu0
        %461 = vmatprep.mubr.bf16.mxu0 0
        %462 = vmatmul.mubr.bf16.gmra.mxu0 %v332
        %v463 = vpop.f32.mrf.mxu0
        %v464 = vadd.f32 %v212, %v463
        %v465 = vpop.f32.mrf.mxu0
        %v466 = vpop.f32.mrf.mxu0
        %v467 = vadd.f32 %v212, %v466
        %v468 = vpop.f32.mrf.mxu0
        %469 = vmatprep.mubr.bf16.mxu0 0
        %470 = vmatmul.mubr.bf16.gmra.mxu0 %v335
        %v471 = vpop.f32.mrf.mxu0
        %v472 = vadd.f32 %v212, %v471
        %v473 = vpop.f32.mrf.mxu0
        %v474 = vpop.f32.mrf.mxu0
        %v475 = vadd.f32 %v212, %v474
        %v476 = vpop.f32.mrf.mxu0
        %477 = vmatprep.mubr.bf16.mxu0 0
        %478 = vmatmul.mubr.bf16.gmra.mxu0 %v338
        %v479 = vpop.f32.mrf.mxu0
        %v480 = vadd.f32 %v212, %v479
        %v481 = vpop.f32.mrf.mxu0
        %v482 = vpop.f32.mrf.mxu0
        %v483 = vadd.f32 %v212, %v482
        %v484 = vpop.f32.mrf.mxu0
        %485 = vmatprep.mubr.bf16.mxu0 0
        %486 = vmatmul.mubr.bf16.gmra.mxu0 %v341
        %v487 = vpop.f32.mrf.mxu0
        %v488 = vadd.f32 %v212, %v487
        %v489 = vpop.f32.mrf.mxu0
        %v490 = vpop.f32.mrf.mxu0
        %v491 = vadd.f32 %v212, %v490
        %v492 = vpop.f32.mrf.mxu0
        %493 = vmatprep.mubr.bf16.mxu0 0
        %494 = vmatmul.mubr.bf16.gmra.mxu0 %v344
        %v495 = vpop.f32.mrf.mxu0
        %v496 = vadd.f32 %v212, %v495
        %v497 = vpop.f32.mrf.mxu0
        %v498 = vpop.f32.mrf.mxu0
        %v499 = vadd.f32 %v212, %v498
        %v500 = vpop.f32.mrf.mxu0
        %501 = vmatprep.mubr.bf16.mxu0 0
        %502 = vmatmul.mubr.bf16.gmra.mxu0 %v347
        %v503 = vpop.f32.mrf.mxu0
        %v504 = vadd.f32 %v212, %v503
        %v505 = vpop.f32.mrf.mxu0
        %v506 = vpop.f32.mrf.mxu0
        %v507 = vadd.f32 %v212, %v506
        %v508 = vpop.f32.mrf.mxu0
        %509 = vdwg.mxu0
        %v510 = vmax.f32 %v384, 0.0
        %v511 = vmax.f32 %v387, 0.0
        %v512 = vmax.f32 %v392, 0.0
        %v513 = vmax.f32 %v395, 0.0
        %v514 = vmax.f32 %v400, 0.0
        %v515 = vmax.f32 %v403, 0.0
        %v516 = vmax.f32 %v408, 0.0
        %v517 = vmax.f32 %v411, 0.0
        %v518 = vmax.f32 %v416, 0.0
        %v519 = vmax.f32 %v419, 0.0
        %v520 = vmax.f32 %v424, 0.0
        %v521 = vmax.f32 %v427, 0.0
        %v522 = vmax.f32 %v432, 0.0
        %v523 = vmax.f32 %v435, 0.0
        %v524 = vmax.f32 %v440, 0.0
        %v525 = vmax.f32 %v443, 0.0
        %v526 = vmax.f32 %v448, 0.0
        %v527 = vmax.f32 %v451, 0.0
        %v528 = vmax.f32 %v456, 0.0
        %v529 = vmax.f32 %v459, 0.0
        %v530 = vmax.f32 %v464, 0.0
        %v531 = vmax.f32 %v467, 0.0
        %v532 = vmax.f32 %v472, 0.0
        %v533 = vmax.f32 %v475, 0.0
        %v534 = vmax.f32 %v480, 0.0
        %v535 = vmax.f32 %v483, 0.0
        %v536 = vmax.f32 %v488, 0.0
        %v537 = vmax.f32 %v491, 0.0
        %v538 = vmax.f32 %v496, 0.0
        %v539 = vmax.f32 %v499, 0.0
        %v540 = vmax.f32 %v504, 0.0
        %v541 = vmax.f32 %v507, 0.0
        %v542 = vpack.c.bf16 %v511, %v510
        %v543 = vpack.c.bf16 %v513, %v512
        %v544 = vpack.c.bf16 %v515, %v514
        %v545 = vpack.c.bf16 %v517, %v516
        %v546 = vpack.c.bf16 %v519, %v518
        %v547 = vpack.c.bf16 %v521, %v520
        %v548 = vpack.c.bf16 %v523, %v522
        %v549 = vpack.c.bf16 %v525, %v524
        %v550 = vpack.c.bf16 %v527, %v526
        %v551 = vpack.c.bf16 %v529, %v528
        %v552 = vpack.c.bf16 %v531, %v530
        %v553 = vpack.c.bf16 %v533, %v532
        %v554 = vpack.c.bf16 %v535, %v534
        %v555 = vpack.c.bf16 %v537, %v536
        %v556 = vpack.c.bf16 %v539, %v538
        %v557 = vpack.c.bf16 %v541, %v540
        %v574 = vunpack.c.l.b16 %v542
        %v575 = vunpack.c.h.b16 %v542
        %v576 = vunpack.c.l.b16 %v543
        %v577 = vunpack.c.h.b16 %v543
        %v578 = vunpack.c.l.b16 %v544
        %v579 = vunpack.c.h.b16 %v544
        %v580 = vunpack.c.l.b16 %v545
        %v581 = vunpack.c.h.b16 %v545
        %v582 = vunpack.c.l.b16 %v546
        %v583 = vunpack.c.h.b16 %v546
        %v584 = vunpack.c.l.b16 %v547
        %v585 = vunpack.c.h.b16 %v547
        %v586 = vunpack.c.l.b16 %v548
        %v587 = vunpack.c.h.b16 %v548
        %v588 = vunpack.c.l.b16 %v549
        %v589 = vunpack.c.h.b16 %v549
        %v590 = vunpack.c.l.b16 %v550
        %v591 = vunpack.c.h.b16 %v550
        %v592 = vunpack.c.l.b16 %v551
        %v593 = vunpack.c.h.b16 %v551
        %v594 = vunpack.c.l.b16 %v552
        %v595 = vunpack.c.h.b16 %v552
        %v596 = vunpack.c.l.b16 %v553
        %v597 = vunpack.c.h.b16 %v553
        %v598 = vunpack.c.l.b16 %v554
        %v599 = vunpack.c.h.b16 %v554
        %v600 = vunpack.c.l.b16 %v555
        %v601 = vunpack.c.h.b16 %v555
        %v602 = vunpack.c.l.b16 %v556
        %v603 = vunpack.c.h.b16 %v556
        %v604 = vunpack.c.l.b16 %v557
        %v605 = vunpack.c.h.b16 %v557
        %v606 = vpack.c.b16 %v574, %v574
        %v607 = vpack.c.b16 %v575, %v575
        %v608 = vpack.c.b16 %v576, %v576
        %v609 = vpack.c.b16 %v577, %v577
        %v610 = vpack.c.b16 %v578, %v578
        %v611 = vpack.c.b16 %v579, %v579
        %v612 = vpack.c.b16 %v580, %v580
        %v613 = vpack.c.b16 %v581, %v581
        %v614 = vpack.c.b16 %v582, %v582
        %v615 = vpack.c.b16 %v583, %v583
        %v616 = vpack.c.b16 %v584, %v584
        %v617 = vpack.c.b16 %v585, %v585
        %v618 = vpack.c.b16 %v586, %v586
        %v619 = vpack.c.b16 %v587, %v587
        %v620 = vpack.c.b16 %v588, %v588
        %v621 = vpack.c.b16 %v589, %v589
        %v622 = vpack.c.b16 %v590, %v590
        %v623 = vpack.c.b16 %v591, %v591
        %v624 = vpack.c.b16 %v592, %v592
        %v625 = vpack.c.b16 %v593, %v593
        %v626 = vpack.c.b16 %v594, %v594
        %v627 = vpack.c.b16 %v595, %v595
        %v628 = vpack.c.b16 %v596, %v596
        %v629 = vpack.c.b16 %v597, %v597
        %v630 = vpack.c.b16 %v598, %v598
        %v631 = vpack.c.b16 %v599, %v599
        %v632 = vpack.c.b16 %v600, %v600
        %v633 = vpack.c.b16 %v601, %v601
        %v634 = vpack.c.b16 %v602, %v602
        %v635 = vpack.c.b16 %v603, %v603
        %v636 = vpack.c.b16 %v604, %v604
        %v637 = vpack.c.b16 %v605, %v605
        %670 = vst [vmem:[%s164] sm:$0xf] %v606
        %671 = vst [vmem:[%s164 + $0x4] sm:$0xf] %v607
        %672 = vst [vmem:[%s164 + $0x8] sm:$0xf] %v608
        %673 = vst [vmem:[%s164 + $0xc] sm:$0xf] %v609
        %674 = vst [vmem:[%s164 + $0x10] sm:$0xf] %v610
        %675 = vst [vmem:[%s164 + $0x14] sm:$0xf] %v611
        %676 = vst [vmem:[%s164 + $0x18] sm:$0xf] %v612
        %677 = vst [vmem:[%s164 + $0x1c] sm:$0xf] %v613
        %678 = vst [vmem:[%s164 + $0x20] sm:$0xf] %v614
        %679 = vst [vmem:[%s164 + $0x24] sm:$0xf] %v615
        %680 = vst [vmem:[%s164 + $0x28] sm:$0xf] %v616
        %681 = vst [vmem:[%s164 + $0x2c] sm:$0xf] %v617
        %682 = vst [vmem:[%s164 + $0x30] sm:$0xf] %v618
        %683 = vst [vmem:[%s164 + $0x34] sm:$0xf] %v619
        %684 = vst [vmem:[%s164 + $0x38] sm:$0xf] %v620
        %685 = vst [vmem:[%s164 + $0x3c] sm:$0xf] %v621
        %686 = vst [vmem:[%s164 + $0x40] sm:$0xf] %v622
        %687 = vst [vmem:[%s164 + $0x44] sm:$0xf] %v623
        %688 = vst [vmem:[%s164 + $0x48] sm:$0xf] %v624
        %689 = vst [vmem:[%s164 + $0x4c] sm:$0xf] %v625
        %690 = vst [vmem:[%s164 + $0x50] sm:$0xf] %v626
        %691 = vst [vmem:[%s164 + $0x54] sm:$0xf] %v627
        %692 = vst [vmem:[%s164 + $0x58] sm:$0xf] %v628
        %693 = vst [vmem:[%s164 + $0x5c] sm:$0xf] %v629
        %694 = vst [vmem:[%s164 + $0x60] sm:$0xf] %v630
        %695 = vst [vmem:[%s164 + $0x64] sm:$0xf] %v631
        %696 = vst [vmem:[%s164 + $0x68] sm:$0xf] %v632
        %697 = vst [vmem:[%s164 + $0x6c] sm:$0xf] %v633
        %698 = vst [vmem:[%s164 + $0x70] sm:$0xf] %v634
        %699 = vst [vmem:[%s164 + $0x74] sm:$0xf] %v635
        %700 = vst [vmem:[%s164 + $0x78] sm:$0xf] %v636
        %701 = vst [vmem:[%s164 + $0x7c] sm:$0xf] %v637
        %s702 = sand.u32 %s93, 1
        %s703 = scalar_lea.sflag [#allocation3], %s702
        %s704 = sand.u32 %s93, 1
        %s705 = smul.addr %s704, 128
        %s706 = scalar_lea.vmem [#allocation2], %s705
        // Predicated region
        $region33: #{tpu_custom_call.1} parent=31 // pred_check
          %p707 = pneg %p103
        $region34: #{tpu_custom_call.1} parent=31 // pred_check_branch
          %709 = sbr.rel (%p707) target = $region36
        $region35: #{tpu_custom_call.1} parent=31 // pred_region
          %s710 = smul.u32 32, %s17
          %s712 = ssub.s32 2048, 2048
          %713 = vsyncadd %s703, %s712
          %s714 = smul.addr %s710, 64
          %s715 = scalar_lea.hbm %s3, %s714
          %s716 = sshll.u32 %s706, 4
          %s717 = int_to_ptr.vmem [resolvable:$true] %s716
          %722 = dma.vmem_to_hbm [thread:$0]  %s717, 2048, %s715, %s703, 64, 64, 4
        $region36: #{tpu_custom_call.1} parent=31 // pred_fallthru
          _
      $region32: #{tpu_custom_call.1} parent=5 // pred_fallthru
        _
      %p723 = scmp.le.s32.totalorder 2, %s12
      // Predicated region
      $region37: #{tpu_custom_call.1} parent=5 // pred_check
        %p724 = pneg %p723
      $region38: #{tpu_custom_call.1} parent=5 // pred_check_branch
        %726 = sbr.rel (%p724) target = $region40
      $region39: #{tpu_custom_call.1} parent=5 // pred_region
        %s727 = ssub.s32 %s12, 2
        // Predicated region
        $region41: #{tpu_custom_call.1} parent=39 // pred_check
          %p728 = pneg %p109
        $region42: #{tpu_custom_call.1} parent=39 // pred_check_branch
          %730 = sbr.rel (%p728) target = $region44
        $region43: #{tpu_custom_call.1} parent=39 // pred_region
          %s731 = sand.u32 %s94, 1
          %s732 = scalar_lea.sflag [#allocation3], %s731
          %s733 = sand.u32 %s94, 1
          %s734 = smul.addr %s733, 128
          %s735 = scalar_lea.vmem [#allocation2], %s734
          %736 = dma.done %s732, 2048
        $region44: #{tpu_custom_call.1} parent=39 // pred_fallthru
          _
      $region40: #{tpu_custom_call.1} parent=5 // pred_fallthru
        _
    $region6: #{tpu_custom_call.1} parent=1 // loop_footer
      %s16 = sadd.s32 1, %s12
    $region7: #{tpu_custom_call.1} parent=1 // loop_footer_branch
      %11 = sbr.rel target = $region3
    $region8: #{tpu_custom_call.1} parent=1 // loop_exit
      _
    %737 = vsyncpa [#allocation3], 1
    %s738 = scalar_lea.sflag [#allocation3], 1
    %739 = vsyncpa %s738, 1

</llo_original>
